<compile_context>
chip_gen: v6e
topology: v6e:2x2x1
jax: 0.10.0
libtpu: 0.0.40
codegen_flags: <defaults>
</compile_context>

<pallas_src>
import functools

import jax
import jax.numpy as jnp
from jax import lax
from jax.experimental import pallas as pl
from jax.experimental.pallas import tpu as pltpu


def _round_up(x, m):
    return (x + m - 1) // m * m


def _vmem_capacity_bytes():
    """Per-core VMEM capacity; conservative fallback if the query is unavailable."""
    try:
        cap = getattr(pltpu.get_tpu_info(), "vmem_capacity_bytes", None)
        if cap:
            return int(cap)
    except Exception:
        pass
    return 64 * 1024 * 1024  # v7x per-TensorCore


def _pick_row_tile(n_rows, bytes_per_row, budget_bytes, cap=512):
    """Largest row tile (<= cap, <= n_rows) whose blocks fit the VMEM budget."""
    t = budget_bytes // max(bytes_per_row, 1)
    return max(1, min(int(t), cap, n_rows))


def _conv_stats_kernel(xcol_ref, w_ref, y_ref, ss_ref):
    """One fat matmul per (batch, row-block) + single-pass partial BN sums.

    xcol_ref: (1, tile_oh, ow, Kc)    bf16   im2col patches for this row block
    w_ref   : (Kc, Cp)                bf16   reshaped conv weights
    y_ref   : (1, tile_oh, ow, Cp)    bf16   conv output block
    ss_ref  : (1, 1, 2, Cp)           f32    per-block [sum(y), sum(y*y)]
    """
    _, tile_oh, ow, kc = xcol_ref.shape
    cp = y_ref.shape[-1]
    m = tile_oh * ow
    patches = xcol_ref[0].reshape(m, kc)                    # lane dim unchanged
    acc = jnp.dot(patches, w_ref[...], preferred_element_type=jnp.float32)
    y_ref[0] = acc.reshape(tile_oh, ow, cp).astype(y_ref.dtype)
    # Partial statistics from the exact fp32 accumulator (reduced in the wrapper).
    ss_ref[0, 0, 0:1, :] = jnp.sum(acc, axis=0, keepdims=True)
    ss_ref[0, 0, 1:2, :] = jnp.sum(acc * acc, axis=0, keepdims=True)


def _bn_act_pool_kernel(y_ref, scale_ref, shift_ref, o_ref, *, pool, neg_slope, owp):
    """BN affine (precomputed global scale/shift) + LeakyReLU + optional 2x2 maxpool.

    y_ref    : (1, pool*tile_op, ow, Cp)  bf16
    scale_ref: (1, Cp), shift_ref: (1, Cp)  f32
    o_ref    : (1, tile_op, owp, Cp)
    """
    y = y_ref[0].astype(jnp.float32)                        # (hb, ow, Cp)
    y = y * scale_ref[...] + shift_ref[...]
    y = jnp.where(y > 0, y, neg_slope * y)
    if pool == 2:
        hb, _, cp = y.shape
        y = y[:, :2 * owp, :]                               # floor-mode crop
        y = y.reshape(hb // 2, 2, owp, 2, cp)
        y = jnp.max(y, axis=3)
        y = jnp.max(y, axis=1)
    o_ref[0] = y.astype(o_ref.dtype)


def conv_layer_forward(x_nchw, w_oihw, bias, gamma, beta, *, stride, padding,
                       use_maxpool, eps=1e-5, neg_slope=0.2,
                       out_dtype=jnp.bfloat16, out_layout="NCHW"):
    """Pallas forward of ConvLayer.  x_nchw: (B, Cin, H, W).

    out_dtype defaults to bf16 (halves the store stream of the mem-bound pass 2);
    pass jnp.float32 for the exact PyTorch-facing dtype.  out_layout="NHWC" skips
    the final transpose when chaining ConvLayers.
    """
    del bias  # train-mode BatchNorm's mean subtraction cancels the conv bias exactly.

    B, cin, H, W = x_nchw.shape
    cout, _, k, _ = w_oihw.shape
    oh = (H + 2 * padding - k) // stride + 1
    ow = (W + 2 * padding - k) // stride + 1
    pool = 2 if use_maxpool else 1
    ohp, owp = oh // pool, ow // pool
    kc = k * k * cin
    # Lane width of the stored intermediate / output: realistic cout (>=64) gets a
    # lane-dense multiple of 128; tiny cout keeps ~its natural width so the HBM
    # intermediate is not inflated 16x.
    cp = _round_up(cout, 128) if cout >= 64 else _round_up(cout, 8)

    # --- layout glue (XLA): NCHW -> NHWC bf16, spatial pad, im2col -------------
    x_nhwc = jnp.transpose(x_nchw, (0, 2, 3, 1)).astype(jnp.bfloat16)
    x_pad = jnp.pad(x_nhwc, ((0, 0), (padding, padding), (padding, padding), (0, 0)))
    taps = []
    for kh in range(k):
        for kw in range(k):
            taps.append(x_pad[:, kh:kh + (oh - 1) * stride + 1:stride,
                               kw:kw + (ow - 1) * stride + 1:stride, :])
    x_col = jnp.concatenate(taps, axis=-1)                  # (B, oh, ow, kc) bf16

    # (kh, kw, cin, cout) reshape order matches the tap concatenation above.
    w_mat = jnp.transpose(w_oihw, (2, 3, 1, 0)).reshape(kc, cout).astype(jnp.bfloat16)
    w_mat = jnp.pad(w_mat, ((0, 0), (0, cp - cout)))

    # --- generation-aware tile sizing ------------------------------------------
    lane = lambda c: _round_up(c, 128)
    sub = lambda r: _round_up(r, 8)
    out_itemsize = jnp.dtype(out_dtype).itemsize
    vmem_cap = _vmem_capacity_bytes()
    vmem_limit = int(min(vmem_cap * 0.75, 100 * 1024 * 1024))
    budget = int(vmem_limit * 0.7)

    # pass-1 VMEM per output row: double-buffered x_col + y blocks (bf16) + fp32 acc
    row1 = (2 * sub(ow) * lane(kc) * 2
            + 2 * sub(ow) * lane(cp) * 2
            + sub(ow) * lane(cp) * 4)
    fixed1 = 2 * sub(kc) * lane(cp) * 2 + 2 * 8 * lane(cp) * 4      # weights + ss
    tile_oh = _pick_row_tile(oh, row1, max(budget - fixed1, row1))

    # pass-2 VMEM per pooled output row: bf16 input block + output block + f32 work
    row2 = (2 * pool * sub(ow) * lane(cp) * 2
            + 2 * sub(owp) * lane(cp) * out_itemsize
            + pool * sub(ow) * lane(cp) * 4)
    tile_op = _pick_row_tile(ohp, row2, budget)

    # --- row padding so tiles need not divide oh / ohp --------------------------
    n_rb2 = pl.cdiv(ohp, tile_op)
    ohp_pad = n_rb2 * tile_op
    oh_need = max(oh, pool * ohp_pad)
    n_rb = pl.cdiv(oh_need, tile_oh)
    oh_pad = n_rb * tile_oh
    if oh_pad > oh:
        # Zero rows -> y == 0 there (no bias) -> zero contribution to BN sums.
        x_col = jnp.pad(x_col, ((0, 0), (0, oh_pad - oh), (0, 0), (0, 0)))

    # --- pass 1: conv matmul + per-block channel sums ---------------------------
    flops1 = 2 * B * oh_pad * ow * kc * cp
    bytes1 = (B * oh_pad * ow * kc * 2 + kc * cp * 2
              + B * oh_pad * ow * cp * 2 + B * n_rb * 2 * cp * 4)
    y_conv, ss = pl.pallas_call(
        _conv_stats_kernel,
        grid=(B, n_rb),
        in_specs=[
            pl.BlockSpec((1, tile_oh, ow, kc), lambda b, r: (b, r, 0, 0)),
            pl.BlockSpec((kc, cp), lambda b, r: (0, 0)),
        ],
        out_specs=(
            pl.BlockSpec((1, tile_oh, ow, cp), lambda b, r: (b, r, 0, 0)),
            pl.BlockSpec((1, 1, 2, cp), lambda b, r: (b, r, 0, 0)),
        ),
        out_shape=(
            jax.ShapeDtypeStruct((B, oh_pad, ow, cp), jnp.bfloat16),
            jax.ShapeDtypeStruct((B, n_rb, 2, cp), jnp.float32),
        ),
        compiler_params=pltpu.CompilerParams(
            dimension_semantics=("parallel", "parallel"),
            vmem_limit_bytes=vmem_limit),
        cost_estimate=pl.CostEstimate(flops=flops1, transcendentals=0,
                                      bytes_accessed=bytes1),
    )(x_col, w_mat)

    # --- tiny global-stat math: exact train-mode BatchNorm over (N, H, W) ------
    n_elems = B * oh * ow
    s1 = jnp.sum(ss[:, :, 0, :], axis=(0, 1))
    s2 = jnp.sum(ss[:, :, 1, :], axis=(0, 1))
    mean = s1 / n_elems
    var = jnp.maximum(s2 / n_elems - mean * mean, 0.0)      # biased var, clamped
    gamma_p = jnp.pad(gamma.astype(jnp.float32), (0, cp - cout), constant_values=1.0)
    beta_p = jnp.pad(beta.astype(jnp.float32), (0, cp - cout))
    scale = (gamma_p * lax.rsqrt(var + eps)).reshape(1, cp)
    shift = (beta_p - mean * scale[0]).reshape(1, cp)

    # --- pass 2: normalize + LeakyReLU + optional 2x2 maxpool -------------------
    hb = pool * tile_op
    kern2 = functools.partial(_bn_act_pool_kernel, pool=pool,
                              neg_slope=neg_slope, owp=owp)
    flops2 = 6 * B * ohp_pad * pool * ow * cp
    bytes2 = (B * pool * ohp_pad * ow * cp * 2
              + B * ohp_pad * owp * cp * out_itemsize + 2 * cp * 4)
    out_pad = pl.pallas_call(
        kern2,
        grid=(B, n_rb2),
        in_specs=[
            pl.BlockSpec((1, hb, ow, cp), lambda b, r: (b, r, 0, 0)),
            pl.BlockSpec((1, cp), lambda b, r: (0, 0)),
            pl.BlockSpec((1, cp), lambda b, r: (0, 0)),
        ],
        out_specs=pl.BlockSpec((1, tile_op, owp, cp), lambda b, r: (b, r, 0, 0)),
        out_shape=jax.ShapeDtypeStruct((B, ohp_pad, owp, cp), out_dtype),
        compiler_params=pltpu.CompilerParams(
            dimension_semantics=("parallel", "parallel"),
            vmem_limit_bytes=vmem_limit),
        cost_estimate=pl.CostEstimate(flops=flops2, transcendentals=0,
                                      bytes_accessed=bytes2),
    )(y_conv, scale, shift)

    out = out_pad[:, :ohp, :, :cout]
    if out_layout == "NCHW":                                # PyTorch-facing layout
        out = jnp.transpose(out, (0, 3, 1, 2))
    return out


def _reference(x_nchw, w_oihw, bias, gamma, beta, *, stride, padding,
               use_maxpool, eps=1e-5, neg_slope=0.2):
    y = lax.conv_general_dilated(
        x_nchw.astype(jnp.float32), w_oihw.astype(jnp.float32),
        window_strides=(stride, stride),
        padding=[(padding, padding), (padding, padding)],
        dimension_numbers=("NCHW", "OIHW", "NCHW"))
    y = y + bias[None, :, None, None]
    mean = jnp.mean(y, axis=(0, 2, 3), keepdims=True)
    var = jnp.mean((y - mean) ** 2, axis=(0, 2, 3), keepdims=True)
    y = (y - mean) * lax.rsqrt(var + eps) * gamma[None, :, None, None] \
        + beta[None, :, None, None]
    y = jnp.where(y > 0, y, neg_slope * y)
    if use_maxpool:
        y = lax.reduce_window(y, -jnp.inf, lax.max,
                              (1, 1, 2, 2), (1, 1, 2, 2), "VALID")
    return y


if __name__ == "__main__":
    # Small shapes consistent with the module: B=2, Cin=4, H=W=16, Cout=8, k=3, s=1, p=1.
    B, CIN, H, W = 2, 4, 16, 16
    COUT, K, STRIDE, PAD = 8, 3, 1, 1
    USE_MAXPOOL = True

    key = jax.random.PRNGKey(0)
    kx, kw, kb = jax.random.split(key, 3)
    x = jax.random.normal(kx, (B, CIN, H, W), jnp.float32)

    fan_in = CIN * K * K
    bound = 1.0 / (fan_in ** 0.5)
    w = jax.random.uniform(kw, (COUT, CIN, K, K), jnp.float32, -bound, bound)
    b = jax.random.uniform(kb, (COUT,), jnp.float32, -bound, bound)
    gamma = jnp.ones((COUT,), jnp.float32)
    beta = jnp.zeros((COUT,), jnp.float32)

    # Feed kernel and reference the same bf16-quantized x/w so the check isolates
    # kernel error from the (intentional) bf16 input cast.
    x_q = x.astype(jnp.bfloat16).astype(jnp.float32)
    w_q = w.astype(jnp.bfloat16).astype(jnp.float32)

    out = conv_layer_forward(x_q, w_q, b, gamma, beta,
                             stride=STRIDE, padding=PAD, use_maxpool=USE_MAXPOOL)
    out = jax.block_until_ready(out).astype(jnp.float32)

    ref = _reference(x_q, w_q, b, gamma, beta,
                     stride=STRIDE, padding=PAD, use_maxpool=USE_MAXPOOL)
    assert out.shape == ref.shape, (out.shape, ref.shape)
    # Tolerance covers the intentional bf16 intermediate/output storage
    # (~2^-8 relative); the conv accumulation and BN stats are exact fp32.
    max_err = float(jnp.max(jnp.abs(out - ref)))
    assert jnp.allclose(out, ref, rtol=2e-2, atol=2e-2), max_err

    print("KERNEL_OK")
</pallas_src>

<mosaic_0001>
module attributes {stable_mosaic.version = 11 : i64} {
  func.func @_conv_stats_kernel(%arg0: i32, %arg1: i32, %arg2: memref<1x16x16x36xbf16, #tpu.memory_space<vmem>>, %arg3: memref<36x8xbf16, #tpu.memory_space<vmem>>, %arg4: memref<1x16x16x8xbf16, #tpu.memory_space<vmem>>, %arg5: memref<1x1x2x8xf32, #tpu.memory_space<vmem>>) attributes {dimension_semantics = [#tpu.dimension_semantics<parallel>, #tpu.dimension_semantics<parallel>], iteration_bounds = array<i64: 2, 1>, scalar_prefetch = 0 : i64, scratch_operands = 0 : i64, tpu.core_type = #tpu.core_type<tc>, window_params = [{transform_indices = @transform_0, window_bounds = array<i64: 1, 16, 16, 36>}, {pipeline_mode = #tpu.pipeline_mode<synchronous>, transform_indices = @transform_1, window_bounds = array<i64: 36, 8>}, {transform_indices = @transform_2, window_bounds = array<i64: 1, 16, 16, 8>}, {transform_indices = @transform_3, window_bounds = array<i64: 1, 1, 2, 8>}]} {
    %c0 = arith.constant 0 : index
    %c0_0 = arith.constant 0 : index
    %c0_1 = arith.constant 0 : index
    %c0_2 = arith.constant 0 : index
    %0 = vector.load %arg2[%c0, %c0_0, %c0_1, %c0_2] : memref<1x16x16x36xbf16, #tpu.memory_space<vmem>>, vector<1x16x16x36xbf16>
    %1 = vector.shape_cast %0 : vector<1x16x16x36xbf16> to vector<16x16x36xbf16>
    %2 = vector.shape_cast %1 : vector<16x16x36xbf16> to vector<256x36xbf16>
    %c0_3 = arith.constant 0 : index
    %c0_4 = arith.constant 0 : index
    %3 = vector.load %arg3[%c0_3, %c0_4] : memref<36x8xbf16, #tpu.memory_space<vmem>>, vector<36x8xbf16>
    %cst = arith.constant dense<0.000000e+00> : vector<256x8xf32>
    %4 = tpu.matmul %2, %3, %cst {dimension_numbers = #tpu.dot_dimension_numbers<[1], [0], [0], [1], [0, 0, 1, 1], [], []>} : vector<256x36xbf16>, vector<36x8xbf16>, vector<256x8xf32> -> vector<256x8xf32>
    %5 = vector.shape_cast %4 : vector<256x8xf32> to vector<16x16x8xf32>
    %6 = arith.truncf %5 : vector<16x16x8xf32> to vector<16x16x8xbf16>
    %c0_5 = arith.constant 0 : index
    %c0_6 = arith.constant 0 : index
    %c0_7 = arith.constant 0 : index
    %c0_8 = arith.constant 0 : index
    %7 = vector.load %arg4[%c0_5, %c0_6, %c0_7, %c0_8] : memref<1x16x16x8xbf16, #tpu.memory_space<vmem>>, vector<1x16x16x8xbf16>
    %8 = vector.shape_cast %7 : vector<1x16x16x8xbf16> to vector<16x16x8xbf16>
    %9 = vector.shape_cast %6 : vector<16x16x8xbf16> to vector<1x16x16x8xbf16>
    tpu.vector_store %arg4[%c0_5, %c0_6, %c0_7, %c0_8], %9 {strides = array<i32>} : memref<1x16x16x8xbf16, #tpu.memory_space<vmem>>, vector<1x16x16x8xbf16>,
    %cst_9 = arith.constant dense<0.000000e+00> : vector<8xf32>
    %10 = vector.multi_reduction <add>, %4, %cst_9 [0] : vector<256x8xf32> to vector<8xf32>
    %11 = vector.shape_cast %10 : vector<8xf32> to vector<1x8xf32>
    %c0_10 = arith.constant 0 : index
    %c0_11 = arith.constant 0 : index
    %c0_12 = arith.constant 0 : index
    %c0_13 = arith.constant 0 : index
    %12 = vector.load %arg5[%c0_10, %c0_11, %c0_12, %c0_13] : memref<1x1x2x8xf32, #tpu.memory_space<vmem>>, vector<1x1x1x8xf32>
    %13 = vector.shape_cast %12 : vector<1x1x1x8xf32> to vector<1x8xf32>
    %14 = vector.shape_cast %11 : vector<1x8xf32> to vector<1x1x1x8xf32>
    tpu.vector_store %arg5[%c0_10, %c0_11, %c0_12, %c0_13], %14 {strides = array<i32>} : memref<1x1x2x8xf32, #tpu.memory_space<vmem>>, vector<1x1x1x8xf32>,
    %15 = arith.mulf %4, %4 : vector<256x8xf32>
    %cst_14 = arith.constant dense<0.000000e+00> : vector<8xf32>
    %16 = vector.multi_reduction <add>, %15, %cst_14 [0] : vector<256x8xf32> to vector<8xf32>
    %17 = vector.shape_cast %16 : vector<8xf32> to vector<1x8xf32>
    %c0_15 = arith.constant 0 : index
    %c0_16 = arith.constant 0 : index
    %c1 = arith.constant 1 : index
    %c0_17 = arith.constant 0 : index
    %18 = vector.load %arg5[%c0_15, %c0_16, %c1, %c0_17] : memref<1x1x2x8xf32, #tpu.memory_space<vmem>>, vector<1x1x1x8xf32>
    %19 = vector.shape_cast %18 : vector<1x1x1x8xf32> to vector<1x8xf32>
    %20 = vector.shape_cast %17 : vector<1x8xf32> to vector<1x1x1x8xf32>
    tpu.vector_store %arg5[%c0_15, %c0_16, %c1, %c0_17], %20 {strides = array<i32>} : memref<1x1x2x8xf32, #tpu.memory_space<vmem>>, vector<1x1x1x8xf32>,
    return
  }
  func.func @transform_0(%arg0: i32, %arg1: i32) -> (i32, i32, i32, i32) {
    %c0_i32 = arith.constant 0 : i32
    %c0_i32_0 = arith.constant 0 : i32
    %c0_i32_1 = arith.constant 0 : i32
    return %arg0, %arg1, %c0_i32, %c0_i32_0 : i32, i32, i32, i32
  }
  func.func @transform_1(%arg0: i32, %arg1: i32) -> (i32, i32) {
    %c0_i32 = arith.constant 0 : i32
    %c0_i32_0 = arith.constant 0 : i32
    %c0_i32_1 = arith.constant 0 : i32
    return %c0_i32, %c0_i32_0 : i32, i32
  }
  func.func @transform_2(%arg0: i32, %arg1: i32) -> (i32, i32, i32, i32) {
    %c0_i32 = arith.constant 0 : i32
    %c0_i32_0 = arith.constant 0 : i32
    %c0_i32_1 = arith.constant 0 : i32
    return %arg0, %arg1, %c0_i32, %c0_i32_0 : i32, i32, i32, i32
  }
  func.func @transform_3(%arg0: i32, %arg1: i32) -> (i32, i32, i32, i32) {
    %c0_i32 = arith.constant 0 : i32
    %c0_i32_0 = arith.constant 0 : i32
    %c0_i32_1 = arith.constant 0 : i32
    return %arg0, %arg1, %c0_i32, %c0_i32_0 : i32, i32, i32, i32
  }
}

</mosaic_0001>

<llo_original>
// kernel: tpu_custom_call.1
$region0: #{tpu_custom_call.1}
  #allocation0 [shape = 'u32[]', space=smem, size = 0x4, offset = 0x4, fixed_abs, tag = 'smem constant byte address 0x4 - core index']
  #allocation1 [shape = 'u32[144,128]{1,0:T(1,128)}', space=vmem, size = 0x12000, scoped, tag = 'internal scratch']
  %s0 = inlined_call_operand.hbm [shape: bf16[2,16,16,36], index: 0, kind: input, shape index: {}]
  %s1 = inlined_call_operand.vmem [shape: bf16[36,8], index: 1, kind: input, shape index: {}]
  %s2 = inlined_call_operand.vmem [shape: bf16[2,16,16,8], index: 2, kind: output, shape index: {0}]
  %s3 = inlined_call_operand.hbm [shape: f32[2,1,2,8], index: 3, kind: output, shape index: {1}]
  %4 = xla_tuple %s2, %s3
  %s5 = sld [smem:[#allocation0]]
  $region53: #{tpu_custom_call.1} parent=0
    _
  %s7 = ssub.s32 1, %s5
  %s8 = scalar_select 0, %s7, %s5
  $region1: #{tpu_custom_call.1} parent=0
    #allocation2 [shape = 'u8[131072]{0}', space=vmem, size = 0x20000, scoped, tag = 'input window, operand 0']
    #allocation3 [shape = 's32[2]{0}', space=sflag, size = 0x8, scoped, tag = 'scoped memory for tpu_custom_call.1']
    #allocation4 [shape = 's32[2]{0}', space=sflag, size = 0x8, scoped, tag = 'scoped memory for tpu_custom_call.1']
    #allocation5 [shape = 'u8[2048]{0}', space=vmem, size = 0x800, scoped, tag = 'output window, operand 1']
    %9 = vsyncpa [#allocation3], 0
    %s10 = scalar_lea.sflag [#allocation3], 1
    %11 = vsyncpa %s10, 0
    %12 = vsyncpa [#allocation4], 0
    %s13 = scalar_lea.sflag [#allocation4], 1
    %14 = vsyncpa %s13, 0
    loop: start=0, step=1, limit=4
    $region2: #{tpu_custom_call.1} parent=1 // loop_pre_header
      _
    $region3: #{tpu_custom_call.1} parent=1 // loop_header
      %s16 = sphi 0, %s20
      %p17 = scmp.ge.s32.totalorder %s16, 4
      %s23 = sphi 0, %s35
      %s24 = sphi 0, %s31
      %s25 = sphi 0, %s23
      %s26 = sphi 0, %s24
      %s27 = sphi 0, %s25
      %s28 = sphi 0, %s26
      %s40 = sphi 0, %s42
      %s43 = sphi 0, %s40
      %s44 = sphi 0, %s43
      %s60 = sphi 0, %s44
      %s64 = sphi 0, %s64
      %s66 = sphi 0, %s64
      %s67 = sphi 0, %s66
      %s81 = sphi 0, %s67
      %s89 = sphi 0, %s91
      %s92 = sphi 0, %s89
      %s93 = sphi 0, %s92
      %s109 = sphi 0, %s93
      %s117 = sphi 0, %s119
      %s120 = sphi 0, %s117
      %s121 = sphi 0, %s120
      %s137 = sphi 0, %s121
    $region4: #{tpu_custom_call.1} parent=1 // loop_header_branch
      %19 = sbr.rel (%p17) target = $region8
    $region5: #{tpu_custom_call.1} parent=1 // loop_body
      %s21 = ssub.s32 %s16, 1
      %s22 = ssub.s32 %s16, 2
      %s29 = sadd.s32 1, %s24
      %p30 = scmp.ge.s32.totalorder %s29, 1
      %s31 = scalar_select %p30, 0, %s29
      %s32 = sadd.s32 1, %s23
      %s33 = scalar_select %p30, %s32, %s23
      %p34 = scmp.ge.s32.totalorder %s33, 2
      %s35 = scalar_select %p34, 0, %s33
      %s36 = ssub.s32 %s23, %s35
      %s37 = ssub.s32 %s24, %s31
      %s38 = sor.u32 %s36, %s37
      %p39 = scmp.eq.s32.totalorder %s38, 0
      %s41 = sadd.s32 %s40, 1
      %s42 = scalar_select %p39, %s40, %s41
      %p45 = pneg %p39
      %p46 = scmp.eq.s32.totalorder %s16, 1
      %p47 = por %p45, %p46
      %p48 = scmp.ne.s32.totalorder %s40, %s43
      %p49 = scmp.eq.s32.totalorder %s16, 0
      %p50 = por %p48, %p49
      %p51 = scmp.ne.s32.totalorder %s40, %s43
      %p52 = scmp.eq.s32.totalorder %s21, 1
      %p53 = por %p51, %p52
      %p54 = scmp.ne.s32.totalorder %s43, %s44
      %p55 = scmp.eq.s32.totalorder %s21, 0
      %p56 = por %p54, %p55
      %p57 = scmp.ne.s32.totalorder %s43, %s44
      %p58 = scmp.eq.s32.totalorder %s22, 1
      %p59 = por %p57, %p58
      %p61 = scmp.ne.s32.totalorder %s44, %s60
      %p62 = scmp.eq.s32.totalorder %s22, 0
      %p63 = por %p61, %p62
      %s65 = sadd.s32 %s64, 1
      %p68 = scmp.eq.s32.totalorder %s16, 1
      %p69 = scmp.ne.s32.totalorder %s64, %s66
      %p70 = scmp.eq.s32.totalorder %s16, 0
      %p71 = por %p69, %p70
      %p72 = scmp.ne.s32.totalorder %s64, %s66
      %p73 = scmp.eq.s32.totalorder %s21, 1
      %p74 = por %p72, %p73
      %p75 = scmp.ne.s32.totalorder %s66, %s67
      %p76 = scmp.eq.s32.totalorder %s21, 0
      %p77 = por %p75, %p76
      %p78 = scmp.ne.s32.totalorder %s66, %s67
      %p79 = scmp.eq.s32.totalorder %s22, 1
      %p80 = por %p78, %p79
      %p82 = scmp.ne.s32.totalorder %s67, %s81
      %p83 = scmp.eq.s32.totalorder %s22, 0
      %p84 = por %p82, %p83
      %s85 = ssub.s32 %s23, %s35
      %s86 = ssub.s32 %s24, %s31
      %s87 = sor.u32 %s85, %s86
      %p88 = scmp.eq.s32.totalorder %s87, 0
      %s90 = sadd.s32 %s89, 1
      %s91 = scalar_select %p88, %s89, %s90
      %p94 = pneg %p88
      %p95 = scmp.eq.s32.totalorder %s16, 1
      %p96 = por %p94, %p95
      %p97 = scmp.ne.s32.totalorder %s89, %s92
      %p98 = scmp.eq.s32.totalorder %s16, 0
      %p99 = por %p97, %p98
      %p100 = scmp.ne.s32.totalorder %s89, %s92
      %p101 = scmp.eq.s32.totalorder %s21, 1
      %p102 = por %p100, %p101
      %p103 = scmp.ne.s32.totalorder %s92, %s93
      %p104 = scmp.eq.s32.totalorder %s21, 0
      %p105 = por %p103, %p104
      %p106 = scmp.ne.s32.totalorder %s92, %s93
      %p107 = scmp.eq.s32.totalorder %s22, 1
      %p108 = por %p106, %p107
      %p110 = scmp.ne.s32.totalorder %s93, %s109
      %p111 = scmp.eq.s32.totalorder %s22, 0
      %p112 = por %p110, %p111
      %s113 = ssub.s32 %s23, %s35
      %s114 = ssub.s32 %s24, %s31
      %s115 = sor.u32 %s113, %s114
      %p116 = scmp.eq.s32.totalorder %s115, 0
      %s118 = sadd.s32 %s117, 1
      %s119 = scalar_select %p116, %s117, %s118
      %p122 = pneg %p116
      %p123 = scmp.eq.s32.totalorder %s16, 1
      %p124 = por %p122, %p123
      %p125 = scmp.ne.s32.totalorder %s117, %s120
      %p126 = scmp.eq.s32.totalorder %s16, 0
      %p127 = por %p125, %p126
      %p128 = scmp.ne.s32.totalorder %s117, %s120
      %p129 = scmp.eq.s32.totalorder %s21, 1
      %p130 = por %p128, %p129
      %p131 = scmp.ne.s32.totalorder %s120, %s121
      %p132 = scmp.eq.s32.totalorder %s21, 0
      %p133 = por %p131, %p132
      %p134 = scmp.ne.s32.totalorder %s120, %s121
      %p135 = scmp.eq.s32.totalorder %s22, 1
      %p136 = por %p134, %p135
      %p138 = scmp.ne.s32.totalorder %s121, %s137
      %p139 = scmp.eq.s32.totalorder %s22, 0
      %p140 = por %p138, %p139
      %p141 = scmp.le.s32.totalorder 1, %s16
      %p142 = scmp.lt.s32.totalorder %s16, 3
      %p143 = pnand %p141, %p142
      %p144 = pneg %p143
      // Predicated region
      $region9: #{tpu_custom_call.1} parent=5 // pred_check
        _
      $region10: #{tpu_custom_call.1} parent=5 // pred_check_branch
        %146 = sbr.rel (%p143) target = $region12
      $region11: #{tpu_custom_call.1} parent=5 // pred_region
        %s147 = ssub.s32 %s16, 1
        // Predicated region
        $region13: #{tpu_custom_call.1} parent=11 // pred_check
          %p148 = pneg %p77
        $region14: #{tpu_custom_call.1} parent=11 // pred_check_branch
          %150 = sbr.rel (%p148) target = $region16
        $region15: #{tpu_custom_call.1} parent=11 // pred_region
          _
        $region16: #{tpu_custom_call.1} parent=11 // pred_fallthru
          _
      $region12: #{tpu_custom_call.1} parent=5 // pred_fallthru
        _
      %p151 = scmp.lt.s32.totalorder %s16, 2
      // Predicated region
      $region17: #{tpu_custom_call.1} parent=5 // pred_check
        %p152 = pneg %p151
      $region18: #{tpu_custom_call.1} parent=5 // pred_check_branch
        %154 = sbr.rel (%p152) target = $region20
      $region19: #{tpu_custom_call.1} parent=5 // pred_region
        // Predicated region
        $region21: #{tpu_custom_call.1} parent=19 // pred_check
          %p155 = pneg %p50
        $region22: #{tpu_custom_call.1} parent=19 // pred_check_branch
          %157 = sbr.rel (%p155) target = $region24
        $region23: #{tpu_custom_call.1} parent=19 // pred_region
          %s158 = sand.u32 %s40, 1
          %s159 = scalar_lea.sflag [#allocation3], %s158
          %s160 = sand.u32 %s40, 1
          %s161 = smul.addr %s160, 128
          %s162 = scalar_lea.vmem [#allocation2], %s161
          %s163 = smul.u32 16, %s24
          %s165 = ssub.s32 2048, 2048
          %166 = vsyncadd %s159, %s165
          %s167 = smul.addr %s163, 2
          %s168 = smul.addr %s23, 32
          %s169 = sadd.s32 %s167, %s168
          %s170 = smul.addr %s169, 64
          %s171 = scalar_lea.hbm %s0, %s170
          %s172 = sshll.u32 %s162, 4
          %s173 = int_to_ptr.vmem [resolvable:$true] %s172
          %178 = dma.hbm_to_vmem [thread:$0]  %s171, 2048, %s173, %s159, 64, 64, 4
        $region24: #{tpu_custom_call.1} parent=19 // pred_fallthru
          _
      $region20: #{tpu_custom_call.1} parent=5 // pred_fallthru
        _
      %p179 = scmp.le.s32.totalorder 1, %s16
      %p180 = scmp.lt.s32.totalorder %s16, 3
      %p181 = pnand %p179, %p180
      %p182 = pneg %p181
      // Predicated region
      $region25: #{tpu_custom_call.1} parent=5 // pred_check
        _
      $region26: #{tpu_custom_call.1} parent=5 // pred_check_branch
        %184 = sbr.rel (%p181) target = $region28
      $region27: #{tpu_custom_call.1} parent=5 // pred_region
        %s185 = ssub.s32 %s16, 1
        %s186 = sand.u32 %s43, 1
        %s187 = scalar_lea.sflag [#allocation3], %s186
        %s188 = sand.u32 %s43, 1
        %s189 = smul.addr %s188, 128
        %s190 = scalar_lea.vmem [#allocation2], %s189
        // Predicated region
        $region29: #{tpu_custom_call.1} parent=27 // pred_check
          %p191 = pneg %p56
        $region30: #{tpu_custom_call.1} parent=27 // pred_check_branch
          %193 = sbr.rel (%p191) target = $region32
        $region31: #{tpu_custom_call.1} parent=27 // pred_region
          %194 = dma.done %s187, 2048
        $region32: #{tpu_custom_call.1} parent=27 // pred_fallthru
          _
        %s195 = sand.u32 %s43, 1
        %s196 = scalar_lea.sflag [#allocation3], %s195
        %s197 = sand.u32 %s43, 1
        %s198 = smul.addr %s197, 128
        %s199 = scalar_lea.vmem [#allocation2], %s198
        %p200 = pneg %p56
        %p201 = pneg %p53
        %p202 = pneg %p77
        %p203 = pneg %p74
        %p204 = pneg %p105
        %p205 = pneg %p102
        %s206 = smul.u32 16, %s26
        %p207 = scmp.lt.s32.totalorder %s25, 1
        %s208 = scalar_select %p207, %s25, 1
        %p209 = scmp.lt.s32.totalorder %s206, 15
        %s210 = scalar_select %p209, %s206, 15
        %s211 = smul.addr %s210, 2
        %s212 = smul.addr %s208, 32
        %s213 = sadd.s32 %s211, %s212
        %s214 = smul.addr %s213, 4
        %s215 = scalar_lea.vmem %s2, %s214
        %p216 = pneg %p133
        %p217 = pneg %p130
        %s218 = sand.u32 %s120, 1
        %s219 = scalar_lea.sflag [#allocation4], %s218
        %s220 = sand.u32 %s120, 1
        %s221 = smul.addr %s220, 2
        %s222 = scalar_lea.vmem [#allocation5], %s221
        %s223 = smul.u32 16, %s26
        %s224 = smul.u32 16, %s26
        %p225 = scmp.lt.s32.totalorder %s25, 1
        %s226 = scalar_select %p225, %s25, 1
        %p227 = scmp.lt.s32.totalorder %s224, 15
        %s228 = scalar_select %p227, %s224, 15
        %s229 = smul.addr %s228, 2
        %s230 = smul.addr %s226, 32
        %s231 = sadd.s32 %s229, %s230
        %s232 = smul.addr %s231, 4
        %s233 = scalar_lea.vmem %s2, %s232
        %s234 = smul.u32 16, %s26
        %v236 = vld [vmem:[%s190] sm:$0xf]
        %v237 = vld [vmem:[%s190 + $0x4] sm:$0xf]
        %v238 = vld [vmem:[%s190 + $0x8] sm:$0xf]
        %v239 = vld [vmem:[%s190 + $0xc] sm:$0xf]
        %v240 = vld [vmem:[%s190 + $0x10] sm:$0xf]
        %v241 = vld [vmem:[%s190 + $0x14] sm:$0xf]
        %v242 = vld [vmem:[%s190 + $0x18] sm:$0xf]
        %v243 = vld [vmem:[%s190 + $0x1c] sm:$0xf]
        %v244 = vld [vmem:[%s190 + $0x20] sm:$0xf]
        %v245 = vld [vmem:[%s190 + $0x24] sm:$0xf]
        %v246 = vld [vmem:[%s190 + $0x28] sm:$0xf]
        %v247 = vld [vmem:[%s190 + $0x2c] sm:$0xf]
        %v248 = vld [vmem:[%s190 + $0x30] sm:$0xf]
        %v249 = vld [vmem:[%s190 + $0x34] sm:$0xf]
        %v250 = vld [vmem:[%s190 + $0x38] sm:$0xf]
        %v251 = vld [vmem:[%s190 + $0x3c] sm:$0xf]
        %v252 = vld [vmem:[%s190 + $0x40] sm:$0xf]
        %v253 = vld [vmem:[%s190 + $0x44] sm:$0xf]
        %v254 = vld [vmem:[%s190 + $0x48] sm:$0xf]
        %v255 = vld [vmem:[%s190 + $0x4c] sm:$0xf]
        %v256 = vld [vmem:[%s190 + $0x50] sm:$0xf]
        %v257 = vld [vmem:[%s190 + $0x54] sm:$0xf]
        %v258 = vld [vmem:[%s190 + $0x58] sm:$0xf]
        %v259 = vld [vmem:[%s190 + $0x5c] sm:$0xf]
        %v260 = vld [vmem:[%s190 + $0x60] sm:$0xf]
        %v261 = vld [vmem:[%s190 + $0x64] sm:$0xf]
        %v262 = vld [vmem:[%s190 + $0x68] sm:$0xf]
        %v263 = vld [vmem:[%s190 + $0x6c] sm:$0xf]
        %v264 = vld [vmem:[%s190 + $0x70] sm:$0xf]
        %v265 = vld [vmem:[%s190 + $0x74] sm:$0xf]
        %v266 = vld [vmem:[%s190 + $0x78] sm:$0xf]
        %v267 = vld [vmem:[%s190 + $0x7c] sm:$0xf]
        %v268 = vld [vmem:[%s1] sm:$0xf]
        %v269 = vld [vmem:[%s1 + $0x4] sm:$0xf]
        %v270 = vld [vmem:[%s1 + $0x8] sm:$0xf]
        %v271 = vld [vmem:[%s1 + $0xc] sm:$0xf]
        %v272 = vld [vmem:[%s1 + $0x10] sm:$0x3]
        %v305 = vunpack.c.l.b16 %v236
        %v306 = vunpack.c.l.b16 %v237
        %v307 = vunpack.c.l.b16 %v238
        %v308 = vunpack.c.l.b16 %v239
        %v309 = vunpack.c.l.b16 %v240
        %v310 = vunpack.c.l.b16 %v241
        %v311 = vunpack.c.l.b16 %v242
        %v312 = vunpack.c.l.b16 %v243
        %v313 = vunpack.c.l.b16 %v244
        %v314 = vunpack.c.l.b16 %v245
        %v315 = vunpack.c.l.b16 %v246
        %v316 = vunpack.c.l.b16 %v247
        %v317 = vunpack.c.l.b16 %v248
        %v318 = vunpack.c.l.b16 %v249
        %v319 = vunpack.c.l.b16 %v250
        %v320 = vunpack.c.l.b16 %v251
        %v321 = vunpack.c.l.b16 %v252
        %v322 = vunpack.c.l.b16 %v253
        %v323 = vunpack.c.l.b16 %v254
        %v324 = vunpack.c.l.b16 %v255
        %v325 = vunpack.c.l.b16 %v256
        %v326 = vunpack.c.l.b16 %v257
        %v327 = vunpack.c.l.b16 %v258
        %v328 = vunpack.c.l.b16 %v259
        %v329 = vunpack.c.l.b16 %v260
        %v330 = vunpack.c.l.b16 %v261
        %v331 = vunpack.c.l.b16 %v262
        %v332 = vunpack.c.l.b16 %v263
        %v333 = vunpack.c.l.b16 %v264
        %v334 = vunpack.c.l.b16 %v265
        %v335 = vunpack.c.l.b16 %v266
        %v336 = vunpack.c.l.b16 %v267
        %v337 = vpack.c.b16 %v306, %v305
        %v338 = vpack.c.b16 %v308, %v307
        %v339 = vpack.c.b16 %v310, %v309
        %v340 = vpack.c.b16 %v312, %v311
        %v341 = vpack.c.b16 %v314, %v313
        %v342 = vpack.c.b16 %v316, %v315
        %v343 = vpack.c.b16 %v318, %v317
        %v344 = vpack.c.b16 %v320, %v319
        %v345 = vpack.c.b16 %v322, %v321
        %v346 = vpack.c.b16 %v324, %v323
        %v347 = vpack.c.b16 %v326, %v325
        %v348 = vpack.c.b16 %v328, %v327
        %v349 = vpack.c.b16 %v330, %v329
        %v350 = vpack.c.b16 %v332, %v331
        %v351 = vpack.c.b16 %v334, %v333
        %v352 = vpack.c.b16 %v336, %v335
        %v358 = vunpack.c.l.b16 %v268
        %v359 = vunpack.c.l.b16 %v269
        %v360 = vunpack.c.l.b16 %v270
        %v361 = vunpack.c.l.b16 %v271
        %v362 = vunpack.c.l.b16 %v272
        %v363 = vpack.c.b16 %v359, %v358
        %v364 = vpack.c.b16 %v361, %v360
        %v365 = vpack.c.b16 %v362, %v362
        %vm368 = vcmask 293888
        %v370 = vsel %vm368, %v337, 0
        %v373 = vsel %vm368, %v338, 0
        %v376 = vsel %vm368, %v339, 0
        %v379 = vsel %vm368, %v340, 0
        %v382 = vsel %vm368, %v341, 0
        %v385 = vsel %vm368, %v342, 0
        %v388 = vsel %vm368, %v343, 0
        %v391 = vsel %vm368, %v344, 0
        %v394 = vsel %vm368, %v345, 0
        %v397 = vsel %vm368, %v346, 0
        %v400 = vsel %vm368, %v347, 0
        %v403 = vsel %vm368, %v348, 0
        %v406 = vsel %vm368, %v349, 0
        %v409 = vsel %vm368, %v350, 0
        %v412 = vsel %vm368, %v351, 0
        %v415 = vsel %vm368, %v352, 0
        %vm417 = vcmask 1041408
        %v419 = vsel %vm417, %v365, 0
        %421 = vmatprep.subr.bf16.mxu0 0
        %422 = vmatpush1.bf16.msra.mxu0 0
        %423 = vmatprep.subr.bf16.mxu0 0
        %424 = vmatpush1.bf16.msra.mxu0 0
        %425 = vmatprep.subr.bf16.mxu0 0
        %426 = vmatpush1.bf16.msra.mxu0 0
        %427 = vmatprep.subr.bf16.mxu0 0
        %428 = vmatpush1.bf16.msra.mxu0 0
        %429 = vmatprep.subr.bf16.mxu0 0
        %430 = vmatpush1.bf16.msra.mxu0 0
        %431 = vmatprep.subr.bf16.mxu0 0
        %432 = vmatpush1.bf16.msra.mxu0 %v419
        %433 = vmatprep.subr.bf16.mxu0 0
        %434 = vmatpush1.bf16.msra.mxu0 %v364
        %435 = vmatprep.subr.bf16.mxu0 0
        %436 = vmatpush1.bf16.msra.mxu0 %v363
        %437 = vmatprep.subr.bf16.mxu0 0
        %438 = vmatpush2.bf16.msra.mxu0 0
        %439 = vmatprep.subr.bf16.mxu0 0
        %440 = vmatpush2.bf16.msra.mxu0 0
        %441 = vmatprep.subr.bf16.mxu0 0
        %442 = vmatpush2.bf16.msra.mxu0 0
        %443 = vmatprep.subr.bf16.mxu0 0
        %444 = vmatpush2.bf16.msra.mxu0 0
        %445 = vmatprep.subr.bf16.mxu0 0
        %446 = vmatpush2.bf16.msra.mxu0 0
        %447 = vmatprep.subr.bf16.mxu0 0
        %448 = vmatpush2.bf16.msra.mxu0 0
        %449 = vmatprep.subr.bf16.mxu0 0
        %450 = vmatpush2.bf16.msra.mxu0 0
        %451 = vmatprep.subr.bf16.mxu0 0
        %452 = vmatpush2.bf16.msra.mxu0 0
        %453 = vmatprep.mubr.bf16.mxu0 0
        %454 = vmatmul.mubr.bf16.gmra.mxu0 %v370
        %v455 = vpop.f32.mrf.mxu0
        %v456 = vadd.f32 0.0, %v455
        %v457 = vpop.f32.mrf.mxu0
        %v458 = vpop.f32.mrf.mxu0
        %v459 = vadd.f32 0.0, %v458
        %v460 = vpop.f32.mrf.mxu0
        %461 = vmatprep.mubr.bf16.mxu0 0
        %462 = vmatmul.mubr.bf16.gmra.mxu0 %v373
        %v463 = vpop.f32.mrf.mxu0
        %v464 = vadd.f32 0.0, %v463
        %v465 = vpop.f32.mrf.mxu0
        %v466 = vpop.f32.mrf.mxu0
        %v467 = vadd.f32 0.0, %v466
        %v468 = vpop.f32.mrf.mxu0
        %469 = vmatprep.mubr.bf16.mxu0 0
        %470 = vmatmul.mubr.bf16.gmra.mxu0 %v376
        %v471 = vpop.f32.mrf.mxu0
        %v472 = vadd.f32 0.0, %v471
        %v473 = vpop.f32.mrf.mxu0
        %v474 = vpop.f32.mrf.mxu0
        %v475 = vadd.f32 0.0, %v474
        %v476 = vpop.f32.mrf.mxu0
        %477 = vmatprep.mubr.bf16.mxu0 0
        %478 = vmatmul.mubr.bf16.gmra.mxu0 %v379
        %v479 = vpop.f32.mrf.mxu0
        %v480 = vadd.f32 0.0, %v479
        %v481 = vpop.f32.mrf.mxu0
        %v482 = vpop.f32.mrf.mxu0
        %v483 = vadd.f32 0.0, %v482
        %v484 = vpop.f32.mrf.mxu0
        %485 = vmatprep.mubr.bf16.mxu0 0
        %486 = vmatmul.mubr.bf16.gmra.mxu0 %v382
        %v487 = vpop.f32.mrf.mxu0
        %v488 = vadd.f32 0.0, %v487
        %v489 = vpop.f32.mrf.mxu0
        %v490 = vpop.f32.mrf.mxu0
        %v491 = vadd.f32 0.0, %v490
        %v492 = vpop.f32.mrf.mxu0
        %493 = vmatprep.mubr.bf16.mxu0 0
        %494 = vmatmul.mubr.bf16.gmra.mxu0 %v385
        %v495 = vpop.f32.mrf.mxu0
        %v496 = vadd.f32 0.0, %v495
        %v497 = vpop.f32.mrf.mxu0
        %v498 = vpop.f32.mrf.mxu0
        %v499 = vadd.f32 0.0, %v498
        %v500 = vpop.f32.mrf.mxu0
        %501 = vmatprep.mubr.bf16.mxu0 0
        %502 = vmatmul.mubr.bf16.gmra.mxu0 %v388
        %v503 = vpop.f32.mrf.mxu0
        %v504 = vadd.f32 0.0, %v503
        %v505 = vpop.f32.mrf.mxu0
        %v506 = vpop.f32.mrf.mxu0
        %v507 = vadd.f32 0.0, %v506
        %v508 = vpop.f32.mrf.mxu0
        %509 = vmatprep.mubr.bf16.mxu0 0
        %510 = vmatmul.mubr.bf16.gmra.mxu0 %v391
        %v511 = vpop.f32.mrf.mxu0
        %v512 = vadd.f32 0.0, %v511
        %v513 = vpop.f32.mrf.mxu0
        %v514 = vpop.f32.mrf.mxu0
        %v515 = vadd.f32 0.0, %v514
        %v516 = vpop.f32.mrf.mxu0
        %517 = vmatprep.mubr.bf16.mxu0 0
        %518 = vmatmul.mubr.bf16.gmra.mxu0 %v394
        %v519 = vpop.f32.mrf.mxu0
        %v520 = vadd.f32 0.0, %v519
        %v521 = vpop.f32.mrf.mxu0
        %v522 = vpop.f32.mrf.mxu0
        %v523 = vadd.f32 0.0, %v522
        %v524 = vpop.f32.mrf.mxu0
        %525 = vmatprep.mubr.bf16.mxu0 0
        %526 = vmatmul.mubr.bf16.gmra.mxu0 %v397
        %v527 = vpop.f32.mrf.mxu0
        %v528 = vadd.f32 0.0, %v527
        %v529 = vpop.f32.mrf.mxu0
        %v530 = vpop.f32.mrf.mxu0
        %v531 = vadd.f32 0.0, %v530
        %v532 = vpop.f32.mrf.mxu0
        %533 = vmatprep.mubr.bf16.mxu0 0
        %534 = vmatmul.mubr.bf16.gmra.mxu0 %v400
        %v535 = vpop.f32.mrf.mxu0
        %v536 = vadd.f32 0.0, %v535
        %v537 = vpop.f32.mrf.mxu0
        %v538 = vpop.f32.mrf.mxu0
        %v539 = vadd.f32 0.0, %v538
        %v540 = vpop.f32.mrf.mxu0
        %541 = vmatprep.mubr.bf16.mxu0 0
        %542 = vmatmul.mubr.bf16.gmra.mxu0 %v403
        %v543 = vpop.f32.mrf.mxu0
        %v544 = vadd.f32 0.0, %v543
        %v545 = vpop.f32.mrf.mxu0
        %v546 = vpop.f32.mrf.mxu0
        %v547 = vadd.f32 0.0, %v546
        %v548 = vpop.f32.mrf.mxu0
        %549 = vmatprep.mubr.bf16.mxu0 0
        %550 = vmatmul.mubr.bf16.gmra.mxu0 %v406
        %v551 = vpop.f32.mrf.mxu0
        %v552 = vadd.f32 0.0, %v551
        %v553 = vpop.f32.mrf.mxu0
        %v554 = vpop.f32.mrf.mxu0
        %v555 = vadd.f32 0.0, %v554
        %v556 = vpop.f32.mrf.mxu0
        %557 = vmatprep.mubr.bf16.mxu0 0
        %558 = vmatmul.mubr.bf16.gmra.mxu0 %v409
        %v559 = vpop.f32.mrf.mxu0
        %v560 = vadd.f32 0.0, %v559
        %v561 = vpop.f32.mrf.mxu0
        %v562 = vpop.f32.mrf.mxu0
        %v563 = vadd.f32 0.0, %v562
        %v564 = vpop.f32.mrf.mxu0
        %565 = vmatprep.mubr.bf16.mxu0 0
        %566 = vmatmul.mubr.bf16.gmra.mxu0 %v412
        %v567 = vpop.f32.mrf.mxu0
        %v568 = vadd.f32 0.0, %v567
        %v569 = vpop.f32.mrf.mxu0
        %v570 = vpop.f32.mrf.mxu0
        %v571 = vadd.f32 0.0, %v570
        %v572 = vpop.f32.mrf.mxu0
        %573 = vmatprep.mubr.bf16.mxu0 0
        %574 = vmatmul.mubr.bf16.gmra.mxu0 %v415
        %v575 = vpop.f32.mrf.mxu0
        %v576 = vadd.f32 0.0, %v575
        %v577 = vpop.f32.mrf.mxu0
        %v578 = vpop.f32.mrf.mxu0
        %v579 = vadd.f32 0.0, %v578
        %v580 = vpop.f32.mrf.mxu0
        %581 = vdwg.mxu0
        %v582 = vpack.c.bf16 %v459, %v456
        %v583 = vpack.c.bf16 %v467, %v464
        %v584 = vpack.c.bf16 %v475, %v472
        %v585 = vpack.c.bf16 %v483, %v480
        %v586 = vpack.c.bf16 %v491, %v488
        %v587 = vpack.c.bf16 %v499, %v496
        %v588 = vpack.c.bf16 %v507, %v504
        %v589 = vpack.c.bf16 %v515, %v512
        %v590 = vpack.c.bf16 %v523, %v520
        %v591 = vpack.c.bf16 %v531, %v528
        %v592 = vpack.c.bf16 %v539, %v536
        %v593 = vpack.c.bf16 %v547, %v544
        %v594 = vpack.c.bf16 %v555, %v552
        %v595 = vpack.c.bf16 %v563, %v560
        %v596 = vpack.c.bf16 %v571, %v568
        %v597 = vpack.c.bf16 %v579, %v576
        %v614 = vunpack.c.l.b16 %v582
        %v615 = vunpack.c.h.b16 %v582
        %v616 = vunpack.c.l.b16 %v583
        %v617 = vunpack.c.h.b16 %v583
        %v618 = vunpack.c.l.b16 %v584
        %v619 = vunpack.c.h.b16 %v584
        %v620 = vunpack.c.l.b16 %v585
        %v621 = vunpack.c.h.b16 %v585
        %v622 = vunpack.c.l.b16 %v586
        %v623 = vunpack.c.h.b16 %v586
        %v624 = vunpack.c.l.b16 %v587
        %v625 = vunpack.c.h.b16 %v587
        %v626 = vunpack.c.l.b16 %v588
        %v627 = vunpack.c.h.b16 %v588
        %v628 = vunpack.c.l.b16 %v589
        %v629 = vunpack.c.h.b16 %v589
        %v630 = vunpack.c.l.b16 %v590
        %v631 = vunpack.c.h.b16 %v590
        %v632 = vunpack.c.l.b16 %v591
        %v633 = vunpack.c.h.b16 %v591
        %v634 = vunpack.c.l.b16 %v592
        %v635 = vunpack.c.h.b16 %v592
        %v636 = vunpack.c.l.b16 %v593
        %v637 = vunpack.c.h.b16 %v593
        %v638 = vunpack.c.l.b16 %v594
        %v639 = vunpack.c.h.b16 %v594
        %v640 = vunpack.c.l.b16 %v595
        %v641 = vunpack.c.h.b16 %v595
        %v642 = vunpack.c.l.b16 %v596
        %v643 = vunpack.c.h.b16 %v596
        %v644 = vunpack.c.l.b16 %v597
        %v645 = vunpack.c.h.b16 %v597
        %v646 = vpack.c.b16 %v614, %v614
        %v647 = vpack.c.b16 %v615, %v615
        %v648 = vpack.c.b16 %v616, %v616
        %v649 = vpack.c.b16 %v617, %v617
        %v650 = vpack.c.b16 %v618, %v618
        %v651 = vpack.c.b16 %v619, %v619
        %v652 = vpack.c.b16 %v620, %v620
        %v653 = vpack.c.b16 %v621, %v621
        %v654 = vpack.c.b16 %v622, %v622
        %v655 = vpack.c.b16 %v623, %v623
        %v656 = vpack.c.b16 %v624, %v624
        %v657 = vpack.c.b16 %v625, %v625
        %v658 = vpack.c.b16 %v626, %v626
        %v659 = vpack.c.b16 %v627, %v627
        %v660 = vpack.c.b16 %v628, %v628
        %v661 = vpack.c.b16 %v629, %v629
        %v662 = vpack.c.b16 %v630, %v630
        %v663 = vpack.c.b16 %v631, %v631
        %v664 = vpack.c.b16 %v632, %v632
        %v665 = vpack.c.b16 %v633, %v633
        %v666 = vpack.c.b16 %v634, %v634
        %v667 = vpack.c.b16 %v635, %v635
        %v668 = vpack.c.b16 %v636, %v636
        %v669 = vpack.c.b16 %v637, %v637
        %v670 = vpack.c.b16 %v638, %v638
        %v671 = vpack.c.b16 %v639, %v639
        %v672 = vpack.c.b16 %v640, %v640
        %v673 = vpack.c.b16 %v641, %v641
        %v674 = vpack.c.b16 %v642, %v642
        %v675 = vpack.c.b16 %v643, %v643
        %v676 = vpack.c.b16 %v644, %v644
        %v677 = vpack.c.b16 %v645, %v645
        %vm710 = vcmask 60416
        %711 = vst.msk [vmem:[%s233] sm:$0xf] %vm710, %v646
        %712 = vst.msk [vmem:[%s233 + $0x4] sm:$0xf] %vm710, %v647
        %713 = vst.msk [vmem:[%s233 + $0x8] sm:$0xf] %vm710, %v648
        %714 = vst.msk [vmem:[%s233 + $0xc] sm:$0xf] %vm710, %v649
        %715 = vst.msk [vmem:[%s233 + $0x10] sm:$0xf] %vm710, %v650
        %716 = vst.msk [vmem:[%s233 + $0x14] sm:$0xf] %vm710, %v651
        %717 = vst.msk [vmem:[%s233 + $0x18] sm:$0xf] %vm710, %v652
        %718 = vst.msk [vmem:[%s233 + $0x1c] sm:$0xf] %vm710, %v653
        %719 = vst.msk [vmem:[%s233 + $0x20] sm:$0xf] %vm710, %v654
        %720 = vst.msk [vmem:[%s233 + $0x24] sm:$0xf] %vm710, %v655
        %721 = vst.msk [vmem:[%s233 + $0x28] sm:$0xf] %vm710, %v656
        %722 = vst.msk [vmem:[%s233 + $0x2c] sm:$0xf] %vm710, %v657
        %723 = vst.msk [vmem:[%s233 + $0x30] sm:$0xf] %vm710, %v658
        %724 = vst.msk [vmem:[%s233 + $0x34] sm:$0xf] %vm710, %v659
        %725 = vst.msk [vmem:[%s233 + $0x38] sm:$0xf] %vm710, %v660
        %726 = vst.msk [vmem:[%s233 + $0x3c] sm:$0xf] %vm710, %v661
        %727 = vst.msk [vmem:[%s233 + $0x40] sm:$0xf] %vm710, %v662
        %728 = vst.msk [vmem:[%s233 + $0x44] sm:$0xf] %vm710, %v663
        %729 = vst.msk [vmem:[%s233 + $0x48] sm:$0xf] %vm710, %v664
        %730 = vst.msk [vmem:[%s233 + $0x4c] sm:$0xf] %vm710, %v665
        %731 = vst.msk [vmem:[%s233 + $0x50] sm:$0xf] %vm710, %v666
        %732 = vst.msk [vmem:[%s233 + $0x54] sm:$0xf] %vm710, %v667
        %733 = vst.msk [vmem:[%s233 + $0x58] sm:$0xf] %vm710, %v668
        %734 = vst.msk [vmem:[%s233 + $0x5c] sm:$0xf] %vm710, %v669
        %735 = vst.msk [vmem:[%s233 + $0x60] sm:$0xf] %vm710, %v670
        %736 = vst.msk [vmem:[%s233 + $0x64] sm:$0xf] %vm710, %v671
        %737 = vst.msk [vmem:[%s233 + $0x68] sm:$0xf] %vm710, %v672
        %738 = vst.msk [vmem:[%s233 + $0x6c] sm:$0xf] %vm710, %v673
        %739 = vst.msk [vmem:[%s233 + $0x70] sm:$0xf] %vm710, %v674
        %740 = vst.msk [vmem:[%s233 + $0x74] sm:$0xf] %vm710, %v675
        %741 = vst.msk [vmem:[%s233 + $0x78] sm:$0xf] %vm710, %v676
        %742 = vst.msk [vmem:[%s233 + $0x7c] sm:$0xf] %vm710, %v677
        %vm743 = vcmask 64512
        %v744 = vsel %vm743, %v456, 0.0
        %v745 = vsel %vm743, %v459, 0.0
        %v746 = vadd.f32 %v744, %v745
        %v747 = vsel %vm743, %v464, 0.0
        %v748 = vadd.f32 %v746, %v747
        %v749 = vsel %vm743, %v467, 0.0
        %v750 = vadd.f32 %v748, %v749
        %v751 = vsel %vm743, %v472, 0.0
        %v752 = vadd.f32 %v750, %v751
        %v753 = vsel %vm743, %v475, 0.0
        %v754 = vadd.f32 %v752, %v753
        %v755 = vsel %vm743, %v480, 0.0
        %v756 = vadd.f32 %v754, %v755
        %v757 = vsel %vm743, %v483, 0.0
        %v758 = vadd.f32 %v756, %v757
        %v759 = vsel %vm743, %v488, 0.0
        %v760 = vadd.f32 %v758, %v759
        %v761 = vsel %vm743, %v491, 0.0
        %v762 = vadd.f32 %v760, %v761
        %v763 = vsel %vm743, %v496, 0.0
        %v764 = vadd.f32 %v762, %v763
        %v765 = vsel %vm743, %v499, 0.0
        %v766 = vadd.f32 %v764, %v765
        %v767 = vsel %vm743, %v504, 0.0
        %v768 = vadd.f32 %v766, %v767
        %v769 = vsel %vm743, %v507, 0.0
        %v770 = vadd.f32 %v768, %v769
        %v771 = vsel %vm743, %v512, 0.0
        %v772 = vadd.f32 %v770, %v771
        %v773 = vsel %vm743, %v515, 0.0
        %v774 = vadd.f32 %v772, %v773
        %v775 = vsel %vm743, %v520, 0.0
        %v776 = vadd.f32 %v774, %v775
        %v777 = vsel %vm743, %v523, 0.0
        %v778 = vadd.f32 %v776, %v777
        %v779 = vsel %vm743, %v528, 0.0
        %v780 = vadd.f32 %v778, %v779
        %v781 = vsel %vm743, %v531, 0.0
        %v782 = vadd.f32 %v780, %v781
        %v783 = vsel %vm743, %v536, 0.0
        %v784 = vadd.f32 %v782, %v783
        %v785 = vsel %vm743, %v539, 0.0
        %v786 = vadd.f32 %v784, %v785
        %v787 = vsel %vm743, %v544, 0.0
        %v788 = vadd.f32 %v786, %v787
        %v789 = vsel %vm743, %v547, 0.0
        %v790 = vadd.f32 %v788, %v789
        %v791 = vsel %vm743, %v552, 0.0
        %v792 = vadd.f32 %v790, %v791
        %v793 = vsel %vm743, %v555, 0.0
        %v794 = vadd.f32 %v792, %v793
        %v795 = vsel %vm743, %v560, 0.0
        %v796 = vadd.f32 %v794, %v795
        %v797 = vsel %vm743, %v563, 0.0
        %v798 = vadd.f32 %v796, %v797
        %v799 = vsel %vm743, %v568, 0.0
        %v800 = vadd.f32 %v798, %v799
        %v801 = vsel %vm743, %v571, 0.0
        %v802 = vadd.f32 %v800, %v801
        %v803 = vsel %vm743, %v576, 0.0
        %v804 = vadd.f32 %v802, %v803
        %v805 = vsel %vm743, %v579, 0.0
        %v806 = vadd.f32 %v804, %v805
        %v807 = vrot.slane %v806, 4
        %v808 = vadd.f32 %v806, %v807
        %v809 = vrot.slane %v808, 2
        %v810 = vadd.f32 %v808, %v809
        %v811 = vrot.slane %v810, 1
        %v812 = vadd.f32 %v810, %v811
        %vm813 = vcmask 57344
        %814 = vst.msk [vmem:[%s222] sm:$0x1] %vm813, %v812
        %v815 = vmul.f32 %v456, %v456
        %v816 = vmul.f32 %v459, %v459
        %v817 = vmul.f32 %v464, %v464
        %v818 = vmul.f32 %v467, %v467
        %v819 = vmul.f32 %v472, %v472
        %v820 = vmul.f32 %v475, %v475
        %v821 = vmul.f32 %v480, %v480
        %v822 = vmul.f32 %v483, %v483
        %v823 = vmul.f32 %v488, %v488
        %v824 = vmul.f32 %v491, %v491
        %v825 = vmul.f32 %v496, %v496
        %v826 = vmul.f32 %v499, %v499
        %v827 = vmul.f32 %v504, %v504
        %v828 = vmul.f32 %v507, %v507
        %v829 = vmul.f32 %v512, %v512
        %v830 = vmul.f32 %v515, %v515
        %v831 = vmul.f32 %v520, %v520
        %v832 = vmul.f32 %v523, %v523
        %v833 = vmul.f32 %v528, %v528
        %v834 = vmul.f32 %v531, %v531
        %v835 = vmul.f32 %v536, %v536
        %v836 = vmul.f32 %v539, %v539
        %v837 = vmul.f32 %v544, %v544
        %v838 = vmul.f32 %v547, %v547
        %v839 = vmul.f32 %v552, %v552
        %v840 = vmul.f32 %v555, %v555
        %v841 = vmul.f32 %v560, %v560
        %v842 = vmul.f32 %v563, %v563
        %v843 = vmul.f32 %v568, %v568
        %v844 = vmul.f32 %v571, %v571
        %v845 = vmul.f32 %v576, %v576
        %v846 = vmul.f32 %v579, %v579
        %v847 = vsel %vm743, %v815, 0.0
        %v848 = vsel %vm743, %v816, 0.0
        %v849 = vadd.f32 %v847, %v848
        %v850 = vsel %vm743, %v817, 0.0
        %v851 = vadd.f32 %v849, %v850
        %v852 = vsel %vm743, %v818, 0.0
        %v853 = vadd.f32 %v851, %v852
        %v854 = vsel %vm743, %v819, 0.0
        %v855 = vadd.f32 %v853, %v854
        %v856 = vsel %vm743, %v820, 0.0
        %v857 = vadd.f32 %v855, %v856
        %v858 = vsel %vm743, %v821, 0.0
        %v859 = vadd.f32 %v857, %v858
        %v860 = vsel %vm743, %v822, 0.0
        %v861 = vadd.f32 %v859, %v860
        %v862 = vsel %vm743, %v823, 0.0
        %v863 = vadd.f32 %v861, %v862
        %v864 = vsel %vm743, %v824, 0.0
        %v865 = vadd.f32 %v863, %v864
        %v866 = vsel %vm743, %v825, 0.0
        %v867 = vadd.f32 %v865, %v866
        %v868 = vsel %vm743, %v826, 0.0
        %v869 = vadd.f32 %v867, %v868
        %v870 = vsel %vm743, %v827, 0.0
        %v871 = vadd.f32 %v869, %v870
        %v872 = vsel %vm743, %v828, 0.0
        %v873 = vadd.f32 %v871, %v872
        %v874 = vsel %vm743, %v829, 0.0
        %v875 = vadd.f32 %v873, %v874
        %v876 = vsel %vm743, %v830, 0.0
        %v877 = vadd.f32 %v875, %v876
        %v878 = vsel %vm743, %v831, 0.0
        %v879 = vadd.f32 %v877, %v878
        %v880 = vsel %vm743, %v832, 0.0
        %v881 = vadd.f32 %v879, %v880
        %v882 = vsel %vm743, %v833, 0.0
        %v883 = vadd.f32 %v881, %v882
        %v884 = vsel %vm743, %v834, 0.0
        %v885 = vadd.f32 %v883, %v884
        %v886 = vsel %vm743, %v835, 0.0
        %v887 = vadd.f32 %v885, %v886
        %v888 = vsel %vm743, %v836, 0.0
        %v889 = vadd.f32 %v887, %v888
        %v890 = vsel %vm743, %v837, 0.0
        %v891 = vadd.f32 %v889, %v890
        %v892 = vsel %vm743, %v838, 0.0
        %v893 = vadd.f32 %v891, %v892
        %v894 = vsel %vm743, %v839, 0.0
        %v895 = vadd.f32 %v893, %v894
        %v896 = vsel %vm743, %v840, 0.0
        %v897 = vadd.f32 %v895, %v896
        %v898 = vsel %vm743, %v841, 0.0
        %v899 = vadd.f32 %v897, %v898
        %v900 = vsel %vm743, %v842, 0.0
        %v901 = vadd.f32 %v899, %v900
        %v902 = vsel %vm743, %v843, 0.0
        %v903 = vadd.f32 %v901, %v902
        %v904 = vsel %vm743, %v844, 0.0
        %v905 = vadd.f32 %v903, %v904
        %v906 = vsel %vm743, %v845, 0.0
        %v907 = vadd.f32 %v905, %v906
        %v908 = vsel %vm743, %v846, 0.0
        %v909 = vadd.f32 %v907, %v908
        %v910 = vrot.slane %v909, 4
        %v911 = vadd.f32 %v909, %v910
        %v912 = vrot.slane %v911, 2
        %v913 = vadd.f32 %v911, %v912
        %v914 = vrot.slane %v913, 1
        %v915 = vadd.f32 %v913, %v914
        %916 = vst.msk [vmem:[%s222 + $0x1] sm:$0x1] %vm813, %v915
        %s917 = smul.u32 16, %s26
        %p918 = scmp.lt.s32.totalorder %s25, 1
        %s919 = scalar_select %p918, %s25, 1
        %p920 = scmp.lt.s32.totalorder %s917, 15
        %s921 = scalar_select %p920, %s917, 15
        %s922 = smul.addr %s921, 2
        %s923 = smul.addr %s919, 32
        %s924 = sadd.s32 %s922, %s923
        %s925 = smul.addr %s924, 4
        %s926 = scalar_lea.vmem %s2, %s925
        %s927 = sand.u32 %s120, 1
        %s928 = scalar_lea.sflag [#allocation4], %s927
        %s929 = sand.u32 %s120, 1
        %s930 = smul.addr %s929, 2
        %s931 = scalar_lea.vmem [#allocation5], %s930
        // Predicated region
        $region33: #{tpu_custom_call.1} parent=27 // pred_check
          %p932 = pneg %p102
        $region34: #{tpu_custom_call.1} parent=27 // pred_check_branch
          %934 = sbr.rel (%p932) target = $region36
        $region35: #{tpu_custom_call.1} parent=27 // pred_region
          %s935 = smul.u32 16, %s26
        $region36: #{tpu_custom_call.1} parent=27 // pred_fallthru
          _
        // Predicated region
        $region37: #{tpu_custom_call.1} parent=27 // pred_check
          %p936 = pneg %p130
        $region38: #{tpu_custom_call.1} parent=27 // pred_check_branch
          %938 = sbr.rel (%p936) target = $region40
        $region39: #{tpu_custom_call.1} parent=27 // pred_region
          %s940 = ssub.s32 32, 32
          %941 = vsyncadd %s928, %s940
          %s942 = sadd.s32 %s26, %s25
          %s943 = smul.addr %s942, 32
          %s944 = scalar_lea.hbm %s3, %s943
          %s946 = sshll.u32 %s931, 4
          %s947 = int_to_ptr.vmem [resolvable:$true] %s946
          %949 = dma.vmem_to_hbm [thread:$0]  %s947, 32, %s944, %s928
        $region40: #{tpu_custom_call.1} parent=27 // pred_fallthru
          _
      $region28: #{tpu_custom_call.1} parent=5 // pred_fallthru
        _
      %p950 = scmp.le.s32.totalorder 2, %s16
      // Predicated region
      $region41: #{tpu_custom_call.1} parent=5 // pred_check
        %p951 = pneg %p950
      $region42: #{tpu_custom_call.1} parent=5 // pred_check_branch
        %953 = sbr.rel (%p951) target = $region44
      $region43: #{tpu_custom_call.1} parent=5 // pred_region
        %s954 = ssub.s32 %s16, 2
        // Predicated region
        $region45: #{tpu_custom_call.1} parent=43 // pred_check
          %p955 = pneg %p108
        $region46: #{tpu_custom_call.1} parent=43 // pred_check_branch
          %957 = sbr.rel (%p955) target = $region48
        $region47: #{tpu_custom_call.1} parent=43 // pred_region
          %s958 = smul.u32 16, %s28
          %p959 = scmp.lt.s32.totalorder %s27, 1
          %s960 = scalar_select %p959, %s27, 1
          %p961 = scmp.lt.s32.totalorder %s958, 15
          %s962 = scalar_select %p961, %s958, 15
          %s963 = smul.addr %s962, 2
          %s964 = smul.addr %s960, 32
          %s965 = sadd.s32 %s963, %s964
          %s966 = smul.addr %s965, 4
          %s967 = scalar_lea.vmem %s2, %s966
        $region48: #{tpu_custom_call.1} parent=43 // pred_fallthru
          _
        // Predicated region
        $region49: #{tpu_custom_call.1} parent=43 // pred_check
          %p968 = pneg %p136
        $region50: #{tpu_custom_call.1} parent=43 // pred_check_branch
          %970 = sbr.rel (%p968) target = $region52
        $region51: #{tpu_custom_call.1} parent=43 // pred_region
          %s971 = sand.u32 %s121, 1
          %s972 = scalar_lea.sflag [#allocation4], %s971
          %s973 = sand.u32 %s121, 1
          %s974 = smul.addr %s973, 2
          %s975 = scalar_lea.vmem [#allocation5], %s974
          %976 = dma.done %s972, 32
        $region52: #{tpu_custom_call.1} parent=43 // pred_fallthru
          _
      $region44: #{tpu_custom_call.1} parent=5 // pred_fallthru
        _
    $region6: #{tpu_custom_call.1} parent=1 // loop_footer
      %s20 = sadd.s32 1, %s16
    $region7: #{tpu_custom_call.1} parent=1 // loop_footer_branch
      %15 = sbr.rel target = $region3
    $region8: #{tpu_custom_call.1} parent=1 // loop_exit
      _
    %977 = vsyncpa [#allocation3], 1
    %s978 = scalar_lea.sflag [#allocation3], 1
    %979 = vsyncpa %s978, 1
    %980 = vsyncpa [#allocation4], 1
    %s981 = scalar_lea.sflag [#allocation4], 1
    %982 = vsyncpa %s981, 1

</llo_original>
